<compile_context>
chip_gen: v6e
topology: v6e:2x2x1
jax: 0.10.0
libtpu: 0.0.40
codegen_flags: <defaults>
</compile_context>

<pallas_src>
import math
import functools

import numpy as np
import jax
import jax.numpy as jnp
from jax.experimental import pallas as pl
from jax.experimental.pallas import tpu as pltpu

NUM_POS_FEATS = 384
TEMPERATURE = 10.0
TM_MAX = 1024  # row tile; 2 x (1024 x 384 x 4B) double-buffered output ~ 3 MiB VMEM


def _pos_embed_kernel(x_ref, sel_ref, phase_ref, w_ref, b_ref, o_ref):
    # x_ref:     (tm, 4)   rows = flattened (batch * num_boxes), cols = (x, y, w, h)
    # sel_ref:   (4, 64)   per-lane column-select * 1/dim_t (host-built constant)
    # phase_ref: (1, 64)   0 or pi/2 per lane (cos(z) == sin(z + pi/2))
    # w_ref:     (64, F)   fcx weight transposed and stacked 4x along the in-dim
    # b_ref:     (1, F)    4 * fcx bias
    # o_ref:     (tm, F)
    xv = x_ref[...]
    # Lane-concatenated phase argument: p[:, c*16 + k] = x[:, c] / dim_t_c[k].
    # Done on the VPU (full f32) as 4 broadcast-multiplies + 3 adds; sel rows are
    # zero outside their own 16-lane group, so the sum is exact.
    p = (xv[:, 0:1] * sel_ref[0:1, :]
         + xv[:, 1:2] * sel_ref[1:2, :]
         + xv[:, 2:3] * sel_ref[2:3, :]
         + xv[:, 3:4] * sel_ref[3:4, :])
    # One EUP pass over the whole (tm, 64) feature block (cos folded via phase).
    feats = jnp.sin(p + phase_ref[...])
    # Single fused MXU matmul against the 4x-stacked fcx weight; bias folded as 4*b.
    o_ref[...] = jnp.dot(feats, w_ref[...],
                         preferred_element_type=jnp.float32) + b_ref[...]


def _make_constants(temperature, num_pos_feats):
    """Host-side (numpy) per-lane constants for the 64-lane feature layout."""
    j = np.arange(16)
    # Interleaved sin/cos path (pos_y / pos_w / pos_h): lane 2k -> sin, 2k+1 -> cos,
    # both at frequency dim_t[2k] = T**(2k/F).
    recip_il = np.asarray(temperature, np.float64) ** (-2.0 * np.floor(j / 2) / num_pos_feats)
    phase_il = np.where(j % 2 == 0, 0.0, np.pi / 2)
    # Block-split path (pos_x, stack dim=2 then flatten): lanes 0..7 -> sin at T**(2j/F),
    # lanes 8..15 -> cos at T**(2(j-8)/F).
    recip_x = np.asarray(temperature, np.float64) ** (-2.0 * (j % 8) / num_pos_feats)
    phase_x = np.where(j < 8, 0.0, np.pi / 2)

    recips = [recip_x, recip_il, recip_il, recip_il]   # column order: x, y, w, h
    phases = [phase_x, phase_il, phase_il, phase_il]
    sel = np.zeros((4, 64), dtype=np.float32)
    for c in range(4):
        sel[c, c * 16:(c + 1) * 16] = recips[c]
    phase = np.concatenate(phases).reshape(1, 64).astype(np.float32)
    return sel, phase


@functools.partial(jax.jit, static_argnames=("temperature", "num_pos_feats", "tm_max"))
def position_embedding_sine(x, w_fcx, b_fcx, *, temperature=TEMPERATURE,
                            num_pos_feats=NUM_POS_FEATS, tm_max=TM_MAX):
    B, N, C = x.shape
    assert C == 4
    F = num_pos_feats
    M = B * N
    x2 = x.reshape(M, 4).astype(jnp.float32)

    # Row tile: small inputs use one sublane-aligned tile; large inputs use fixed
    # tm = tm_max tiles (padded), giving a pipelined multi-step "parallel" grid.
    M8 = ((M + 7) // 8) * 8
    tm = M8 if M8 <= tm_max else tm_max
    M_pad = pl.cdiv(M, tm) * tm
    if M_pad != M:
        x2 = jnp.pad(x2, ((0, M_pad - M), (0, 0)))
    grid = (M_pad // tm,)

    sel_np, phase_np = _make_constants(temperature, num_pos_feats)
    sel = jnp.asarray(sel_np)                                   # (4, 64)
    phase = jnp.asarray(phase_np)                               # (1, 64)
    w_t = jnp.asarray(w_fcx, jnp.float32).T                     # (16, F)
    w64 = jnp.concatenate([w_t, w_t, w_t, w_t], axis=0)         # (64, F): x|y|w|h
    b4 = 4.0 * jnp.asarray(b_fcx, jnp.float32).reshape(1, F)    # sum of 4 bias adds

    out = pl.pallas_call(
        _pos_embed_kernel,
        out_shape=jax.ShapeDtypeStruct((M_pad, F), jnp.float32),
        grid_spec=pltpu.PrefetchScalarGridSpec(
            num_scalar_prefetch=0,
            grid=grid,
            in_specs=[
                pl.BlockSpec((tm, 4), lambda i: (i, 0)),
                pl.BlockSpec((4, 64), lambda i: (0, 0)),
                pl.BlockSpec((1, 64), lambda i: (0, 0)),
                pl.BlockSpec((64, F), lambda i: (0, 0)),
                pl.BlockSpec((1, F), lambda i: (0, 0)),
            ],
            out_specs=pl.BlockSpec((tm, F), lambda i: (i, 0)),
        ),
        compiler_params=pltpu.CompilerParams(
            dimension_semantics=("parallel",),
            vmem_limit_bytes=32 << 20),
    )(x2, sel, phase, w64, b4)
    return out[:M].reshape(B, N, F)


def reference(x, w_fcx, b_fcx, temperature=TEMPERATURE, num_pos_feats=NUM_POS_FEATS):
    # Pure-JAX transcription of the PyTorch forward (for verification).
    B, N, _ = x.shape
    x_embed, y_embed, w_embed, h_embed = (x[:, :, i] for i in range(4))
    dim_t = jnp.arange(16, dtype=jnp.float32)
    dim_t = temperature ** (2 * jnp.floor(dim_t / 2) / num_pos_feats)
    px = x_embed[:, :, None] / dim_t
    py = y_embed[:, :, None] / dim_t
    pw = w_embed[:, :, None] / dim_t
    ph = h_embed[:, :, None] / dim_t
    pos_x = jnp.stack((jnp.sin(px[:, :, 0::2]), jnp.cos(px[:, :, 1::2])), axis=2).reshape(B, N, -1)
    pos_y = jnp.stack((jnp.sin(py[:, :, 0::2]), jnp.cos(py[:, :, 1::2])), axis=3).reshape(B, N, -1)
    pos_w = jnp.stack((jnp.sin(pw[:, :, 0::2]), jnp.cos(pw[:, :, 1::2])), axis=3).reshape(B, N, -1)
    pos_h = jnp.stack((jnp.sin(ph[:, :, 0::2]), jnp.cos(ph[:, :, 1::2])), axis=3).reshape(B, N, -1)
    lin = lambda z: jnp.dot(z, w_fcx.T, precision=jax.lax.Precision.HIGHEST) + b_fcx
    return lin(pos_y) + lin(pos_x) + lin(pos_h) + lin(pos_w)


if __name__ == "__main__":
    key = jax.random.PRNGKey(0)
    k_x, k_w, k_b = jax.random.split(key, 3)

    B, N = 2, 8
    x = jax.random.uniform(k_x, (B, N, 4), jnp.float32)

    # fcx = nn.Linear(16, num_pos_feats): weight (F, 16), bias (F,)
    bound = 1.0 / math.sqrt(16)
    w_fcx = jax.random.uniform(k_w, (NUM_POS_FEATS, 16), jnp.float32, -bound, bound)
    b_fcx = jax.random.uniform(k_b, (NUM_POS_FEATS,), jnp.float32, -bound, bound)
    # TODO(synk): fcy/fcw/fch are declared in __init__ but never used in forward (module reuses fcx).

    out = position_embedding_sine(x, w_fcx, b_fcx)
    out = jax.block_until_ready(out)

    ref = reference(x, w_fcx, b_fcx)
    assert out.shape == (B, N, NUM_POS_FEATS)
    assert jnp.allclose(out, ref, rtol=1e-2, atol=1e-2), \
        f"max abs diff {jnp.max(jnp.abs(out - ref))}"
    print("KERNEL_OK")
</pallas_src>

<mosaic_0001>
module attributes {stable_mosaic.version = 11 : i64} {
  func.func @_pos_embed_kernel(%arg0: i32, %arg1: memref<16x4xf32, #tpu.memory_space<vmem>>, %arg2: memref<4x64xf32, #tpu.memory_space<vmem>>, %arg3: memref<1x64xf32, #tpu.memory_space<vmem>>, %arg4: memref<64x384xf32, #tpu.memory_space<vmem>>, %arg5: memref<1x384xf32, #tpu.memory_space<vmem>>, %arg6: memref<16x384xf32, #tpu.memory_space<vmem>>) attributes {dimension_semantics = [#tpu.dimension_semantics<parallel>], iteration_bounds = array<i64: 1>, scalar_prefetch = 0 : i64, scratch_operands = 0 : i64, tpu.core_type = #tpu.core_type<tc>, window_params = [{transform_indices = @transform_0, window_bounds = array<i64: 16, 4>}, {pipeline_mode = #tpu.pipeline_mode<synchronous>, transform_indices = @transform_1, window_bounds = array<i64: 4, 64>}, {pipeline_mode = #tpu.pipeline_mode<synchronous>, transform_indices = @transform_2, window_bounds = array<i64: 1, 64>}, {pipeline_mode = #tpu.pipeline_mode<synchronous>, transform_indices = @transform_3, window_bounds = array<i64: 64, 384>}, {pipeline_mode = #tpu.pipeline_mode<synchronous>, transform_indices = @transform_4, window_bounds = array<i64: 1, 384>}, {transform_indices = @transform_5, window_bounds = array<i64: 16, 384>}]} {
    %c0 = arith.constant 0 : index
    %c0_0 = arith.constant 0 : index
    %0 = vector.load %arg1[%c0, %c0_0] : memref<16x4xf32, #tpu.memory_space<vmem>>, vector<16x4xf32>
    %1 = vector.extract_strided_slice %0 {offsets = [0, 0], sizes = [16, 1], strides = [1, 1]} : vector<16x4xf32> to vector<16x1xf32>
    %c0_1 = arith.constant 0 : index
    %c0_2 = arith.constant 0 : index
    %2 = vector.load %arg2[%c0_1, %c0_2] : memref<4x64xf32, #tpu.memory_space<vmem>>, vector<1x64xf32>
    %3 = vector.broadcast %1 : vector<16x1xf32> to vector<16x64xf32>
    %4 = vector.broadcast %2 : vector<1x64xf32> to vector<16x64xf32>
    %5 = arith.mulf %3, %4 : vector<16x64xf32>
    %6 = vector.extract_strided_slice %0 {offsets = [0, 1], sizes = [16, 1], strides = [1, 1]} : vector<16x4xf32> to vector<16x1xf32>
    %c1 = arith.constant 1 : index
    %c0_3 = arith.constant 0 : index
    %7 = vector.load %arg2[%c1, %c0_3] : memref<4x64xf32, #tpu.memory_space<vmem>>, vector<1x64xf32>
    %8 = vector.broadcast %6 : vector<16x1xf32> to vector<16x64xf32>
    %9 = vector.broadcast %7 : vector<1x64xf32> to vector<16x64xf32>
    %10 = arith.mulf %8, %9 : vector<16x64xf32>
    %11 = arith.addf %5, %10 : vector<16x64xf32>
    %12 = vector.extract_strided_slice %0 {offsets = [0, 2], sizes = [16, 1], strides = [1, 1]} : vector<16x4xf32> to vector<16x1xf32>
    %c2 = arith.constant 2 : index
    %c0_4 = arith.constant 0 : index
    %13 = vector.load %arg2[%c2, %c0_4] : memref<4x64xf32, #tpu.memory_space<vmem>>, vector<1x64xf32>
    %14 = vector.broadcast %12 : vector<16x1xf32> to vector<16x64xf32>
    %15 = vector.broadcast %13 : vector<1x64xf32> to vector<16x64xf32>
    %16 = arith.mulf %14, %15 : vector<16x64xf32>
    %17 = arith.addf %11, %16 : vector<16x64xf32>
    %18 = vector.extract_strided_slice %0 {offsets = [0, 3], sizes = [16, 1], strides = [1, 1]} : vector<16x4xf32> to vector<16x1xf32>
    %c3 = arith.constant 3 : index
    %c0_5 = arith.constant 0 : index
    %19 = vector.load %arg2[%c3, %c0_5] : memref<4x64xf32, #tpu.memory_space<vmem>>, vector<1x64xf32>
    %20 = vector.broadcast %18 : vector<16x1xf32> to vector<16x64xf32>
    %21 = vector.broadcast %19 : vector<1x64xf32> to vector<16x64xf32>
    %22 = arith.mulf %20, %21 : vector<16x64xf32>
    %23 = arith.addf %17, %22 : vector<16x64xf32>
    %c0_6 = arith.constant 0 : index
    %c0_7 = arith.constant 0 : index
    %24 = vector.load %arg3[%c0_6, %c0_7] : memref<1x64xf32, #tpu.memory_space<vmem>>, vector<1x64xf32>
    %25 = vector.broadcast %24 : vector<1x64xf32> to vector<16x64xf32>
    %26 = arith.addf %23, %25 : vector<16x64xf32>
    %27 = math.sin %26 : vector<16x64xf32>
    %c0_8 = arith.constant 0 : index
    %c0_9 = arith.constant 0 : index
    %28 = vector.load %arg4[%c0_8, %c0_9] : memref<64x384xf32, #tpu.memory_space<vmem>>, vector<64x384xf32>
    %cst = arith.constant dense<0.000000e+00> : vector<16x384xf32>
    %29 = tpu.matmul %27, %28, %cst {dimension_numbers = #tpu.dot_dimension_numbers<[1], [0], [0], [1], [0, 0, 1, 1], [], []>} : vector<16x64xf32>, vector<64x384xf32>, vector<16x384xf32> -> vector<16x384xf32>
    %c0_10 = arith.constant 0 : index
    %c0_11 = arith.constant 0 : index
    %30 = vector.load %arg5[%c0_10, %c0_11] : memref<1x384xf32, #tpu.memory_space<vmem>>, vector<1x384xf32>
    %31 = vector.broadcast %30 : vector<1x384xf32> to vector<16x384xf32>
    %32 = arith.addf %29, %31 : vector<16x384xf32>
    %c0_12 = arith.constant 0 : index
    %c0_13 = arith.constant 0 : index
    %33 = vector.load %arg6[%c0_12, %c0_13] : memref<16x384xf32, #tpu.memory_space<vmem>>, vector<16x384xf32>
    tpu.vector_store %arg6[%c0_12, %c0_13], %32 {strides = array<i32>} : memref<16x384xf32, #tpu.memory_space<vmem>>, vector<16x384xf32>,
    return
  }
  func.func @transform_0(%arg0: i32) -> (i32, i32) {
    %c0_i32 = arith.constant 0 : i32
    %c0_i32_0 = arith.constant 0 : i32
    return %arg0, %c0_i32 : i32, i32
  }
  func.func @transform_1(%arg0: i32) -> (i32, i32) {
    %c0_i32 = arith.constant 0 : i32
    %c0_i32_0 = arith.constant 0 : i32
    %c0_i32_1 = arith.constant 0 : i32
    return %c0_i32, %c0_i32_0 : i32, i32
  }
  func.func @transform_2(%arg0: i32) -> (i32, i32) {
    %c0_i32 = arith.constant 0 : i32
    %c0_i32_0 = arith.constant 0 : i32
    %c0_i32_1 = arith.constant 0 : i32
    return %c0_i32, %c0_i32_0 : i32, i32
  }
  func.func @transform_3(%arg0: i32) -> (i32, i32) {
    %c0_i32 = arith.constant 0 : i32
    %c0_i32_0 = arith.constant 0 : i32
    %c0_i32_1 = arith.constant 0 : i32
    return %c0_i32, %c0_i32_0 : i32, i32
  }
  func.func @transform_4(%arg0: i32) -> (i32, i32) {
    %c0_i32 = arith.constant 0 : i32
    %c0_i32_0 = arith.constant 0 : i32
    %c0_i32_1 = arith.constant 0 : i32
    return %c0_i32, %c0_i32_0 : i32, i32
  }
  func.func @transform_5(%arg0: i32) -> (i32, i32) {
    %c0_i32 = arith.constant 0 : i32
    %c0_i32_0 = arith.constant 0 : i32
    return %arg0, %c0_i32 : i32, i32
  }
}

</mosaic_0001>

<llo_original>
// kernel: position_embedding_sine.1
$region0: #{position_embedding_sine.1}
  #allocation0 [shape = 'u32[]', space=smem, size = 0x4, offset = 0x4, fixed_abs, tag = 'smem constant byte address 0x4 - core index']
  #allocation1 [shape = 'u32[144,128]{1,0:T(1,128)}', space=vmem, size = 0x12000, scoped, tag = 'internal scratch']
  %s0 = inlined_call_operand.vmem [shape: f32[16,4], index: 0, kind: input, shape index: {}]
  %s1 = inlined_call_operand.vmem [shape: f32[4,64], index: 1, kind: input, shape index: {}]
  %s2 = inlined_call_operand.vmem [shape: f32[1,64], index: 2, kind: input, shape index: {}]
  %s3 = inlined_call_operand.vmem [shape: f32[64,384], index: 3, kind: input, shape index: {}]
  %s4 = inlined_call_operand.vmem [shape: f32[1,384], index: 4, kind: input, shape index: {}]
  %s5 = inlined_call_operand.hbm [shape: f32[16,384], index: 5, kind: output, shape index: {}]
  %s6 = sld [smem:[#allocation0]]
  $region30: #{position_embedding_sine.1} parent=0
    _
  %s8 = ssub.s32 1, %s6
  %s9 = scalar_select 0, %s8, %s6
  $region1: #{position_embedding_sine.1} parent=0
    #allocation2 [shape = 'u8[24576]{0}', space=vmem, size = 0x6000, scoped, tag = 'output window, operand 0, single buffered']
    #allocation3 [shape = 's32[1]{0}', space=sflag, size = 0x4, scoped, tag = 'scoped memory for position_embedding_sine.1']
    %10 = vsyncpa [#allocation3], 0
    // Predicated region
    $region2: #{position_embedding_sine.1} parent=1 // pred_check
      _
    $region3: #{position_embedding_sine.1} parent=1 // pred_check_branch
      %12 = sbr.rel (0) target = $region5
    $region4: #{position_embedding_sine.1} parent=1 // pred_region
      _
    $region5: #{position_embedding_sine.1} parent=1 // pred_fallthru
      _
    // Predicated region
    $region6: #{position_embedding_sine.1} parent=1 // pred_check
      _
    $region7: #{position_embedding_sine.1} parent=1 // pred_check_branch
      %14 = sbr.rel (0) target = $region9
    $region8: #{position_embedding_sine.1} parent=1 // pred_region
      _
    $region9: #{position_embedding_sine.1} parent=1 // pred_fallthru
      _
    // Predicated region
    $region10: #{position_embedding_sine.1} parent=1 // pred_check
      _
    $region11: #{position_embedding_sine.1} parent=1 // pred_check_branch
      %16 = sbr.rel (0) target = $region13
    $region12: #{position_embedding_sine.1} parent=1 // pred_region
      _
    $region13: #{position_embedding_sine.1} parent=1 // pred_fallthru
      _
    // Predicated region
    $region14: #{position_embedding_sine.1} parent=1 // pred_check
      _
    $region15: #{position_embedding_sine.1} parent=1 // pred_check_branch
      %18 = sbr.rel (0) target = $region17
    $region16: #{position_embedding_sine.1} parent=1 // pred_region
      _
    $region17: #{position_embedding_sine.1} parent=1 // pred_fallthru
      _
    // Predicated region
    $region18: #{position_embedding_sine.1} parent=1 // pred_check
      _
    $region19: #{position_embedding_sine.1} parent=1 // pred_check_branch
      %20 = sbr.rel (0) target = $region21
    $region20: #{position_embedding_sine.1} parent=1 // pred_region
      _
    $region21: #{position_embedding_sine.1} parent=1 // pred_fallthru
      _
    %v21 = vld [vmem:[%s0] sm:$0xff]
    %v22 = vld [vmem:[%s0 + $0x8] sm:$0xff]
    %v23 = vld [vmem:[%s1] sm:$0x1]
    %25 = vset.pattern.permute.xlu0 0
    %26 = vperm.xlu0 %25, %v21
    %v27 = vpop.permute.xlu0 %26
    %30 = vset.pattern.permute.xlu0 0
    %31 = vperm.xlu0 %30, %v22
    %v32 = vpop.permute.xlu0 %31
    %v34 = vlaneseq
    %v35 = vshrl.u32 %v34, 7
    %v36 = vsub.s32 0, %v35
    %v37 = vrot.slane %v23, %v36
    %v38 = vmul.f32 %v27, %v37
    %v39 = vmul.f32 %v32, %v37
    %v40 = vld [vmem:[%s1 + $0x1] sm:$0x1]
    %41 = vset.pattern.permute.xlu0 1
    %42 = vperm.xlu0 %41, %v21
    %v43 = vpop.permute.xlu0 %42
    %45 = vset.pattern.permute.xlu0 1
    %46 = vperm.xlu0 %45, %v22
    %v47 = vpop.permute.xlu0 %46
    %v49 = vlaneseq
    %v50 = vshrl.u32 %v49, 7
    %v51 = vsub.s32 0, %v50
    %v52 = vrot.slane %v40, %v51
    %v53 = vmul.f32 %v43, %v52
    %v54 = vmul.f32 %v47, %v52
    %v55 = vadd.f32 %v38, %v53
    %v56 = vadd.f32 %v39, %v54
    %v57 = vld [vmem:[%s1 + $0x2] sm:$0x1]
    %58 = vset.pattern.permute.xlu0 2
    %59 = vperm.xlu0 %58, %v21
    %v60 = vpop.permute.xlu0 %59
    %62 = vset.pattern.permute.xlu0 2
    %63 = vperm.xlu0 %62, %v22
    %v64 = vpop.permute.xlu0 %63
    %v66 = vlaneseq
    %v67 = vshrl.u32 %v66, 7
    %v68 = vsub.s32 0, %v67
    %v69 = vrot.slane %v57, %v68
    %v70 = vmul.f32 %v60, %v69
    %v71 = vmul.f32 %v64, %v69
    %v72 = vadd.f32 %v55, %v70
    %v73 = vadd.f32 %v56, %v71
    %v74 = vld [vmem:[%s1 + $0x3] sm:$0x1]
    %75 = vset.pattern.permute.xlu0 3
    %76 = vperm.xlu0 %75, %v21
    %v77 = vpop.permute.xlu0 %76
    %79 = vset.pattern.permute.xlu0 3
    %80 = vperm.xlu0 %79, %v22
    %v81 = vpop.permute.xlu0 %80
    %v83 = vlaneseq
    %v84 = vshrl.u32 %v83, 7
    %v85 = vsub.s32 0, %v84
    %v86 = vrot.slane %v74, %v85
    %v87 = vmul.f32 %v77, %v86
    %v88 = vmul.f32 %v81, %v86
    %v89 = vadd.f32 %v72, %v87
    %v90 = vadd.f32 %v73, %v88
    %v91 = vld [vmem:[%s2] sm:$0x1]
    %v93 = vlaneseq
    %v94 = vshrl.u32 %v93, 7
    %v95 = vsub.s32 0, %v94
    %v96 = vrot.slane %v91, %v95
    %v98 = vadd.f32 %v89, %v96
    %v99 = vadd.f32 %v90, %v96
    %v100 = vand.u32 2147483647, %v98
    %vm101 = vcmp.le.f32.partialorder %v100, 0.7853982
    %vm102 = vcmp.lt.s32.totalorder %v98, 0
    %v103 = vand.u32 %v98, 2139095040
    %v104 = vshrl.u32 %v103, 23
    %v105 = vsub.s32 %v104, 127
    %v106 = vand.u32 2147483647, %v98
    %v107 = vand.u32 %v106, 8388607
    %v108 = vor.u32 %v107, 8388608
    %v109 = vsub.s32 0, %v108
    %v110 = vadd.s32 %v105, 1
    %vm111 = vcmp.gt.s32.totalorder %v110, 0
    %v112 = vsel %vm111, %v110, 0
    %v113 = vshrl.u32 %v112, 5
    %v114 = vand.u32 %v112, 31
    %v115 = vsub.s32 32, %v114
    %v116 = vshrl.u32 683565275, %v115
    %v117 = vshll.u32 683565275, %v114
    %v118 = vshrl.u32 2475754826, %v115
    %v119 = vor.u32 %v117, %v118
    %v120 = vshll.u32 2475754826, %v114
    %v121 = vshrl.u32 2131351028, %v115
    %v122 = vor.u32 %v120, %v121
    %v123 = vshll.u32 2131351028, %v114
    %v124 = vshrl.u32 2102212464, %v115
    %v125 = vor.u32 %v123, %v124
    %v126 = vshll.u32 2102212464, %v114
    %v127 = vshrl.u32 920167782, %v115
    %v128 = vor.u32 %v126, %v127
    %v129 = vshll.u32 920167782, %v114
    %v130 = vshrl.u32 1326507024, %v115
    %v131 = vor.u32 %v129, %v130
    %vm132 = vcmp.lt.s32.totalorder %v113, 1
    %vm133 = vcmp.lt.s32.totalorder %v113, 2
    %vm134 = vcmp.lt.s32.totalorder %v113, 3
    %vm135 = vcmp.lt.s32.totalorder %v113, 4
    %v136 = vsel %vm132, %v116, %v119
    %v137 = vsel %vm135, %v125, 2102212464
    %v138 = vsel %vm134, %v122, %v137
    %v139 = vsel %vm133, %v136, %v138
    %v140 = vsel %vm132, %v119, %v122
    %v141 = vsel %vm135, %v128, 920167782
    %v142 = vsel %vm134, %v125, %v141
    %v143 = vsel %vm133, %v140, %v142
    %v144 = vsel %vm132, %v122, %v125
    %v145 = vsel %vm135, %v131, 1326507024
    %v146 = vsel %vm134, %v128, %v145
    %v147 = vsel %vm133, %v144, %v146
    %v148 = vshll.u32 %v108, 8
    %v149 = vmul.u32.u64.compose %v148, %v147
    %v150 = vextract.low.u32 %v149
    %v151 = vextract.high.u32 %v149
    %v152 = vmul.u32.u64.compose %v148, %v143
    %v153 = vextract.low.u32 %v152
    %v154 = vextract.high.u32 %v152
    %v155 = vmul.u32 %v148, %v139
    %v156 = vadd.s32 %v151, %v153
    %vm157 = vc.u32 %v151, %v153
    %v158 = vadd.s32 %v154, 1
    %v159 = vsel %vm157, %v158, %v154
    %v160 = vadd.s32 %v155, %v159
    %v161 = vadd.s32 %v160, 536870912
    %v162 = vshrl.u32 %v161, 30
    %v163 = vshll.u32 %v162, 30
    %v164 = vsub.s32 %v160, %v163
    %vm165 = vcmp.lt.s32.totalorder %v164, 0
    %v166 = vsub.s32 0, %v164
    %v167 = vsel %vm165, %v166, %v164
    %v168 = vclz %v167
    %v169 = vsub.s32 %v168, 2
    %vm170 = vcmp.gt.s32.totalorder 0, %v169
    %v171 = vsel %vm170, 0, %v169
    %v172 = vsub.s32 32, %v171
    %v173 = vshll.u32 %v164, %v171
    %v174 = vshrl.u32 %v156, %v172
    %v175 = vor.u32 %v173, %v174
    %v176 = vsub.s32 4294967266, %v171
    %v177 = vadd.s32 %v176, 127
    %v178 = vshll.u32 %v177, 23
    %v179 = vor.u32 4788187, %v178
    %v180 = vand.u32 2147483647, %v179
    %v182 = vcvt.s32.f32 %v175
    %v183 = vmul.f32 %v182, %v180
    %v184 = vxor.u32 %v183, 2147483648
    %v185 = vsel %vm102, %v184, %v183
    %v186 = vsub.s32 4, %v162
    %v187 = vsel %vm102, %v186, %v162
    %v188 = vsel %vm101, %v98, %v185
    %v189 = vsel %vm101, 0, %v187
    %v190 = vcosq.f32.pop %v188
    %v191 = vsinq.f32.pop %v188
    %vm192 = vweird.f32 %v98
    %v193 = vadd.s32 %v189, 3
    %v194 = vand.u32 %v193, 3
    %vm195 = vcmp.lt.s32.totalorder %v194, 2
    %vm196 = vcmp.eq.s32.totalorder %v194, 0
    %v197 = vxor.u32 %v191, 2147483648
    %v198 = vsel %vm196, %v190, %v197
    %vm199 = vcmp.eq.s32.totalorder %v194, 2
    %v200 = vxor.u32 %v190, 2147483648
    %v201 = vsel %vm199, %v200, %v191
    %v202 = vsel %vm195, %v198, %v201
    %v203 = vsel %vm192, nan, %v202
    %v204 = vand.u32 2147483647, %v99
    %vm205 = vcmp.le.f32.partialorder %v204, 0.7853982
    %vm206 = vcmp.lt.s32.totalorder %v99, 0
    %v207 = vand.u32 %v99, 2139095040
    %v208 = vshrl.u32 %v207, 23
    %v209 = vsub.s32 %v208, 127
    %v210 = vand.u32 2147483647, %v99
    %v211 = vand.u32 %v210, 8388607
    %v212 = vor.u32 %v211, 8388608
    %v213 = vsub.s32 0, %v212
    %v214 = vadd.s32 %v209, 1
    %vm215 = vcmp.gt.s32.totalorder %v214, 0
    %v216 = vsel %vm215, %v214, 0
    %v217 = vshrl.u32 %v216, 5
    %v218 = vand.u32 %v216, 31
    %v219 = vsub.s32 32, %v218
    %v220 = vshrl.u32 683565275, %v219
    %v221 = vshll.u32 683565275, %v218
    %v222 = vshrl.u32 2475754826, %v219
    %v223 = vor.u32 %v221, %v222
    %v224 = vshll.u32 2475754826, %v218
    %v225 = vshrl.u32 2131351028, %v219
    %v226 = vor.u32 %v224, %v225
    %v227 = vshll.u32 2131351028, %v218
    %v228 = vshrl.u32 2102212464, %v219
    %v229 = vor.u32 %v227, %v228
    %v230 = vshll.u32 2102212464, %v218
    %v231 = vshrl.u32 920167782, %v219
    %v232 = vor.u32 %v230, %v231
    %v233 = vshll.u32 920167782, %v218
    %v234 = vshrl.u32 1326507024, %v219
    %v235 = vor.u32 %v233, %v234
    %vm236 = vcmp.lt.s32.totalorder %v217, 1
    %vm237 = vcmp.lt.s32.totalorder %v217, 2
    %vm238 = vcmp.lt.s32.totalorder %v217, 3
    %vm239 = vcmp.lt.s32.totalorder %v217, 4
    %v240 = vsel %vm236, %v220, %v223
    %v241 = vsel %vm239, %v229, 2102212464
    %v242 = vsel %vm238, %v226, %v241
    %v243 = vsel %vm237, %v240, %v242
    %v244 = vsel %vm236, %v223, %v226
    %v245 = vsel %vm239, %v232, 920167782
    %v246 = vsel %vm238, %v229, %v245
    %v247 = vsel %vm237, %v244, %v246
    %v248 = vsel %vm236, %v226, %v229
    %v249 = vsel %vm239, %v235, 1326507024
    %v250 = vsel %vm238, %v232, %v249
    %v251 = vsel %vm237, %v248, %v250
    %v252 = vshll.u32 %v212, 8
    %v253 = vmul.u32.u64.compose %v252, %v251
    %v254 = vextract.low.u32 %v253
    %v255 = vextract.high.u32 %v253
    %v256 = vmul.u32.u64.compose %v252, %v247
    %v257 = vextract.low.u32 %v256
    %v258 = vextract.high.u32 %v256
    %v259 = vmul.u32 %v252, %v243
    %v260 = vadd.s32 %v255, %v257
    %vm261 = vc.u32 %v255, %v257
    %v262 = vadd.s32 %v258, 1
    %v263 = vsel %vm261, %v262, %v258
    %v264 = vadd.s32 %v259, %v263
    %v265 = vadd.s32 %v264, 536870912
    %v266 = vshrl.u32 %v265, 30
    %v267 = vshll.u32 %v266, 30
    %v268 = vsub.s32 %v264, %v267
    %vm269 = vcmp.lt.s32.totalorder %v268, 0
    %v270 = vsub.s32 0, %v268
    %v271 = vsel %vm269, %v270, %v268
    %v272 = vclz %v271
    %v273 = vsub.s32 %v272, 2
    %vm274 = vcmp.gt.s32.totalorder 0, %v273
    %v275 = vsel %vm274, 0, %v273
    %v276 = vsub.s32 32, %v275
    %v277 = vshll.u32 %v268, %v275
    %v278 = vshrl.u32 %v260, %v276
    %v279 = vor.u32 %v277, %v278
    %v280 = vsub.s32 4294967266, %v275
    %v281 = vadd.s32 %v280, 127
    %v282 = vshll.u32 %v281, 23
    %v283 = vor.u32 4788187, %v282
    %v284 = vand.u32 2147483647, %v283
    %v286 = vcvt.s32.f32 %v279
    %v287 = vmul.f32 %v286, %v284
    %v288 = vxor.u32 %v287, 2147483648
    %v289 = vsel %vm206, %v288, %v287
    %v290 = vsub.s32 4, %v266
    %v291 = vsel %vm206, %v290, %v266
    %v292 = vsel %vm205, %v99, %v289
    %v293 = vsel %vm205, 0, %v291
    %v294 = vcosq.f32.pop %v292
    %v295 = vsinq.f32.pop %v292
    %vm296 = vweird.f32 %v99
    %v297 = vadd.s32 %v293, 3
    %v298 = vand.u32 %v297, 3
    %vm299 = vcmp.lt.s32.totalorder %v298, 2
    %vm300 = vcmp.eq.s32.totalorder %v298, 0
    %v301 = vxor.u32 %v295, 2147483648
    %v302 = vsel %vm300, %v294, %v301
    %vm303 = vcmp.eq.s32.totalorder %v298, 2
    %v304 = vxor.u32 %v294, 2147483648
    %v305 = vsel %vm303, %v304, %v295
    %v306 = vsel %vm299, %v302, %v305
    %v307 = vsel %vm296, nan, %v306
    %v308 = vld [vmem:[%s3] sm:$0xff]
    %v309 = vld [vmem:[%s3 + $0x8] sm:$0xff]
    %v310 = vld [vmem:[%s3 + $0x10] sm:$0xff]
    %v311 = vld [vmem:[%s3 + $0x18] sm:$0xff]
    %v312 = vld [vmem:[%s3 + $0x20] sm:$0xff]
    %v313 = vld [vmem:[%s3 + $0x28] sm:$0xff]
    %v314 = vld [vmem:[%s3 + $0x30] sm:$0xff]
    %v315 = vld [vmem:[%s3 + $0x38] sm:$0xff]
    %v316 = vld [vmem:[%s3 + $0x40] sm:$0xff]
    %v317 = vld [vmem:[%s3 + $0x48] sm:$0xff]
    %v318 = vld [vmem:[%s3 + $0x50] sm:$0xff]
    %v319 = vld [vmem:[%s3 + $0x58] sm:$0xff]
    %v320 = vld [vmem:[%s3 + $0x60] sm:$0xff]
    %v321 = vld [vmem:[%s3 + $0x68] sm:$0xff]
    %v322 = vld [vmem:[%s3 + $0x70] sm:$0xff]
    %v323 = vld [vmem:[%s3 + $0x78] sm:$0xff]
    %v324 = vld [vmem:[%s3 + $0x80] sm:$0xff]
    %v325 = vld [vmem:[%s3 + $0x88] sm:$0xff]
    %v326 = vld [vmem:[%s3 + $0x90] sm:$0xff]
    %v327 = vld [vmem:[%s3 + $0x98] sm:$0xff]
    %v328 = vld [vmem:[%s3 + $0xa0] sm:$0xff]
    %v329 = vld [vmem:[%s3 + $0xa8] sm:$0xff]
    %v330 = vld [vmem:[%s3 + $0xb0] sm:$0xff]
    %v331 = vld [vmem:[%s3 + $0xb8] sm:$0xff]
    %v332 = vld [vmem:[%s4] sm:$0x7]
    %v334 = vlaneseq
    %v335 = vshrl.u32 %v334, 7
    %v336 = vsub.s32 0, %v335
    %v337 = vrot.slane %v332, %v336
    %v338 = vlaneseq
    %v339 = vshrl.u32 %v338, 7
    %v340 = vsub.s32 1, %v339
    %v341 = vrot.slane %v332, %v340
    %v342 = vlaneseq
    %v343 = vshrl.u32 %v342, 7
    %v344 = vsub.s32 2, %v343
    %v345 = vrot.slane %v332, %v344
    %vm349 = vcmask 523264
    %v351 = vsel %vm349, %v203, 0
    %v354 = vsel %vm349, %v307, 0
    %356 = vmatprep.subr.mxu0 0.0
    %357 = vmatpush1.msra.mxu0 0.0
    %358 = vmatprep.subr.mxu0 0.0
    %359 = vmatpush1.msra.mxu0 0.0
    %360 = vmatprep.subr.mxu0 0.0
    %361 = vmatpush1.msra.mxu0 0.0
    %362 = vmatprep.subr.mxu0 0.0
    %363 = vmatpush1.msra.mxu0 0.0
    %364 = vmatprep.subr.mxu0 0.0
    %365 = vmatpush1.msra.mxu0 0.0
    %366 = vmatprep.subr.mxu0 0.0
    %367 = vmatpush1.msra.mxu0 0.0
    %368 = vmatprep.subr.mxu0 0.0
    %369 = vmatpush1.msra.mxu0 0.0
    %370 = vmatprep.subr.mxu0 0.0
    %371 = vmatpush1.msra.mxu0 0.0
    %372 = vmatprep.subr.mxu0 %v330
    %373 = vmatpush1.msra.mxu0 %v329
    %374 = vmatprep.subr.mxu0 %v327
    %375 = vmatpush1.msra.mxu0 %v326
    %376 = vmatprep.subr.mxu0 %v324
    %377 = vmatpush1.msra.mxu0 %v323
    %378 = vmatprep.subr.mxu0 %v321
    %379 = vmatpush1.msra.mxu0 %v320
    %380 = vmatprep.subr.mxu0 %v318
    %381 = vmatpush1.msra.mxu0 %v317
    %382 = vmatprep.subr.mxu0 %v315
    %383 = vmatpush1.msra.mxu0 %v314
    %384 = vmatprep.subr.mxu0 %v312
    %385 = vmatpush1.msra.mxu0 %v311
    %386 = vmatprep.subr.mxu0 %v309
    %387 = vmatpush1.msra.mxu0 %v308
    %388 = vmatprep.subr.mxu0 0.0
    %389 = vmatpush2.msra.mxu0 0.0
    %390 = vmatprep.subr.mxu0 0.0
    %391 = vmatpush2.msra.mxu0 0.0
    %392 = vmatprep.subr.mxu0 0.0
    %393 = vmatpush2.msra.mxu0 0.0
    %394 = vmatprep.subr.mxu0 0.0
    %395 = vmatpush2.msra.mxu0 0.0
    %396 = vmatprep.subr.mxu0 0.0
    %397 = vmatpush2.msra.mxu0 0.0
    %398 = vmatprep.subr.mxu0 0.0
    %399 = vmatpush2.msra.mxu0 0.0
    %400 = vmatprep.subr.mxu0 0.0
    %401 = vmatpush2.msra.mxu0 0.0
    %402 = vmatprep.subr.mxu0 0.0
    %403 = vmatpush2.msra.mxu0 0.0
    %404 = vmatprep.subr.mxu0 0.0
    %405 = vmatpush2.msra.mxu0 0.0
    %406 = vmatprep.subr.mxu0 0.0
    %407 = vmatpush2.msra.mxu0 0.0
    %408 = vmatprep.subr.mxu0 0.0
    %409 = vmatpush2.msra.mxu0 0.0
    %410 = vmatprep.subr.mxu0 0.0
    %411 = vmatpush2.msra.mxu0 0.0
    %412 = vmatprep.subr.mxu0 0.0
    %413 = vmatpush2.msra.mxu0 0.0
    %414 = vmatprep.subr.mxu0 0.0
    %415 = vmatpush2.msra.mxu0 0.0
    %416 = vmatprep.subr.mxu0 0.0
    %417 = vmatpush2.msra.mxu0 0.0
    %418 = vmatprep.subr.mxu0 0.0
    %419 = vmatpush2.msra.mxu0 0.0
    %420 = vmatprep.mubr.f32.mxu0 0.0
    %421 = vmatmul.mubr.f32.gmra.mxu0 %v351
    %v422 = vpop.f32.mrf.mxu0
    %v423 = vadd.f32 %v337, %v422
    %v424 = vpop.f32.mrf.mxu0
    %v425 = vadd.f32 %v341, %v424
    %426 = vmatprep.mubr.f32.mxu0 0.0
    %427 = vmatmul.mubr.f32.gmra.mxu0 %v354
    %v428 = vpop.f32.mrf.mxu0
    %v429 = vadd.f32 %v337, %v428
    %v430 = vpop.f32.mrf.mxu0
    %v431 = vadd.f32 %v341, %v430
    %432 = vdwg.mxu0
    %433 = vmatprep.subr.mxu0 0.0
    %434 = vmatpush1.msra.mxu0 0.0
    %435 = vmatprep.subr.mxu0 0.0
    %436 = vmatpush1.msra.mxu0 0.0
    %437 = vmatprep.subr.mxu0 0.0
    %438 = vmatpush1.msra.mxu0 0.0
    %439 = vmatprep.subr.mxu0 0.0
    %440 = vmatpush1.msra.mxu0 0.0
    %441 = vmatprep.subr.mxu0 0.0
    %442 = vmatpush1.msra.mxu0 0.0
    %443 = vmatprep.subr.mxu0 0.0
    %444 = vmatpush1.msra.mxu0 0.0
    %445 = vmatprep.subr.mxu0 0.0
    %446 = vmatpush1.msra.mxu0 0.0
    %447 = vmatprep.subr.mxu0 0.0
    %448 = vmatpush1.msra.mxu0 0.0
    %449 = vmatprep.subr.mxu0 0.0
    %450 = vmatpush1.msra.mxu0 %v331
    %451 = vmatprep.subr.mxu0 0.0
    %452 = vmatpush1.msra.mxu0 %v328
    %453 = vmatprep.subr.mxu0 0.0
    %454 = vmatpush1.msra.mxu0 %v325
    %455 = vmatprep.subr.mxu0 0.0
    %456 = vmatpush1.msra.mxu0 %v322
    %457 = vmatprep.subr.mxu0 0.0
    %458 = vmatpush1.msra.mxu0 %v319
    %459 = vmatprep.subr.mxu0 0.0
    %460 = vmatpush1.msra.mxu0 %v316
    %461 = vmatprep.subr.mxu0 0.0
    %462 = vmatpush1.msra.mxu0 %v313
    %463 = vmatprep.subr.mxu0 0.0
    %464 = vmatpush1.msra.mxu0 %v310
    %465 = vmatprep.subr.mxu0 0.0
    %466 = vmatpush2.msra.mxu0 0.0
    %467 = vmatprep.subr.mxu0 0.0
    %468 = vmatpush2.msra.mxu0 0.0
    %469 = vmatprep.subr.mxu0 0.0
    %470 = vmatpush2.msra.mxu0 0.0
    %471 = vmatprep.subr.mxu0 0.0
    %472 = vmatpush2.msra.mxu0 0.0
    %473 = vmatprep.subr.mxu0 0.0
    %474 = vmatpush2.msra.mxu0 0.0
    %475 = vmatprep.subr.mxu0 0.0
    %476 = vmatpush2.msra.mxu0 0.0
    %477 = vmatprep.subr.mxu0 0.0
    %478 = vmatpush2.msra.mxu0 0.0
    %479 = vmatprep.subr.mxu0 0.0
    %480 = vmatpush2.msra.mxu0 0.0
    %481 = vmatprep.subr.mxu0 0.0
    %482 = vmatpush2.msra.mxu0 0.0
    %483 = vmatprep.subr.mxu0 0.0
    %484 = vmatpush2.msra.mxu0 0.0
    %485 = vmatprep.subr.mxu0 0.0
    %486 = vmatpush2.msra.mxu0 0.0
    %487 = vmatprep.subr.mxu0 0.0
    %488 = vmatpush2.msra.mxu0 0.0
    %489 = vmatprep.subr.mxu0 0.0
    %490 = vmatpush2.msra.mxu0 0.0
    %491 = vmatprep.subr.mxu0 0.0
    %492 = vmatpush2.msra.mxu0 0.0
    %493 = vmatprep.subr.mxu0 0.0
    %494 = vmatpush2.msra.mxu0 0.0
    %495 = vmatprep.subr.mxu0 0.0
    %496 = vmatpush2.msra.mxu0 0.0
    %497 = vmatprep.mubr.f32.mxu0 0.0
    %498 = vmatmul.mubr.f32.gmra.mxu0 %v351
    %v499 = vpop.f32.mrf.mxu0
    %v500 = vadd.f32 %v345, %v499
    %v501 = vpop.f32.mrf.mxu0
    %502 = vmatprep.mubr.f32.mxu0 0.0
    %503 = vmatmul.mubr.f32.gmra.mxu0 %v354
    %v504 = vpop.f32.mrf.mxu0
    %v505 = vadd.f32 %v345, %v504
    %v506 = vpop.f32.mrf.mxu0
    %507 = vdwg.mxu0
    %508 = vst [vmem:[#allocation2] sm:$0xff] %v423
    %509 = vst [vmem:[#allocation2 + $0x8] sm:$0xff] %v425
    %510 = vst [vmem:[#allocation2 + $0x10] sm:$0xff] %v500
    %511 = vst [vmem:[#allocation2 + $0x18] sm:$0xff] %v429
    %512 = vst [vmem:[#allocation2 + $0x20] sm:$0xff] %v431
    %513 = vst [vmem:[#allocation2 + $0x28] sm:$0xff] %v505
    // Predicated region
    $region22: #{position_embedding_sine.1} parent=1 // pred_check
      _
    $region23: #{position_embedding_sine.1} parent=1 // pred_check_branch
      %515 = sbr.rel (0) target = $region25
    $region24: #{position_embedding_sine.1} parent=1 // pred_region
      %s517 = ssub.s32 768, 768
      %518 = vsyncadd [#allocation3], %s517
      %s519 = sshll.u32 [#allocation2], 4
      %s520 = int_to_ptr.vmem [resolvable:$true] %s519
      %525 = dma.vmem_to_hbm [thread:$0]  %s520, 768, %s5, [#allocation3], 384, 384, 24
    $region25: #{position_embedding_sine.1} parent=1 // pred_fallthru
      _
    // Predicated region
    $region26: #{position_embedding_sine.1} parent=1 // pred_check
      _
    $region27: #{position_embedding_sine.1} parent=1 // pred_check_branch
      %527 = sbr.rel (0) target = $region29
    $region28: #{position_embedding_sine.1} parent=1 // pred_region
      %528 = dma.done [#allocation3], 768
    $region29: #{position_embedding_sine.1} parent=1 // pred_fallthru
      _
    %529 = vsyncpa [#allocation3], 1

</llo_original>
